<compile_context>
chip_gen: v6e
topology: v6e:2x2x1
jax: 0.10.0
libtpu: 0.0.40
codegen_flags: <defaults>
</compile_context>

<pallas_src>
import jax
import jax.numpy as jnp
from jax.experimental import pallas as pl
from jax.experimental.pallas import tpu as pltpu


def _round_up(x, m):
    return ((x + m - 1) // m) * m


def mlp_kernel(x_ref, w1_ref, b1_ref, w2_ref, b2_ref, w3_ref, b3_ref, o_ref):
    x = x_ref[...]                          # [K,  TB]  f32 (batch on lanes)
    w1 = w1_ref[...]                        # [H1, K]   f32

    # ---- Layer 1 on the VPU: K is tiny (2); an MXU pass would pad the
    #      contraction to 128/256 rows for 2 useful ones.  Unrolled FMAs. ----
    h1 = b1_ref[...]                        # [H1, 1] -> broadcasts over TB lanes
    for k in range(w1.shape[1]):            # unrolled at trace time (K == 2)
        h1 = h1 + w1[:, k:k + 1] * x[k:k + 1, :]
    h1 = jnp.maximum(h1, 0.0)               # [H1, TB] ReLU

    # ---- Layer 2: [H2,H1] @ [H1,TB] on the MXU, f32 accumulation. ----
    h2 = jnp.dot(w2_ref[...], h1, preferred_element_type=jnp.float32)
    h2 = jnp.maximum(h2 + b2_ref[...], 0.0)  # [H2, TB]

    # ---- Layer 3: [OUT_PAD,H2] @ [H2,TB]; only 8 sublane rows of sigmoid. ----
    logits = jnp.dot(w3_ref[...], h2, preferred_element_type=jnp.float32)
    o_ref[...] = jax.nn.sigmoid(logits + b3_ref[...])   # [OUT_PAD, TB]


def perceptron_forward(x, params, *, tb=None):
    """x: [B, input_size] f32; params: dict of w1,b1,w2,b2,w3,b3 (f32,
    stored as [in_features, out_features] / [1, out_features])."""
    B, K = x.shape
    H1 = params["w1"].shape[1]
    H2 = params["w2"].shape[1]
    out_size = params["w3"].shape[1]

    # Transposed (PyTorch-orientation) weights / column biases for the kernel.
    w1t = params["w1"].astype(jnp.float32).T            # [H1, K]
    b1t = params["b1"].astype(jnp.float32).T            # [H1, 1]
    w2t = params["w2"].astype(jnp.float32).T            # [H2, H1]
    b2t = params["b2"].astype(jnp.float32).T            # [H2, 1]

    # Row-pad the last layer to a full sublane group (3 -> 8 rows).  Padded
    # rows produce sigmoid(0)=0.5 garbage and are sliced off below.
    out_pad = _round_up(out_size, 8)
    w3p = (jnp.zeros((out_pad, H2), jnp.float32)
           .at[:out_size, :].set(params["w3"].astype(jnp.float32).T))
    b3p = (jnp.zeros((out_pad, 1), jnp.float32)
           .at[:out_size, :].set(params["b3"].astype(jnp.float32).T))

    # Batch tile (lane axis): big to amortize per-grid-step overhead and give
    # large contiguous DMAs, but capped so large batches still give the
    # "parallel" grid axis >= 2 steps (keeps both v7x TensorCores busy).
    if tb is None:
        tb = min(4096, _round_up((B + 1) // 2, 128))
    tb = max(128, _round_up(tb, 128))
    Bp = _round_up(B, tb)

    # One cheap transpose+pad of the tiny [B, 2] input in the wrapper.
    xt = x.astype(jnp.float32).T                          # [K, B]
    xtp = xt if Bp == B else jnp.pad(xt, ((0, 0), (0, Bp - B)))

    # VMEM budget from the tiled footprint (fits easily on v5e/v6e/v7x 64 MiB).
    f32 = 4
    tile_bytes = 2 * (K * tb + out_pad * tb) * f32            # 2x-buffered x/out
    weight_bytes = 2 * (H1 * K + H1 + H2 * H1 + H2
                        + out_pad * H2 + out_pad) * f32
    act_bytes = 2 * (H1 + H2 + out_pad) * tb * f32            # h1/h2/logits temps
    vmem_limit = int(tile_bytes + weight_bytes + act_bytes + (16 << 20))

    const = lambda a: pl.BlockSpec(a.shape, lambda i: (0,) * a.ndim)

    out = pl.pallas_call(
        mlp_kernel,
        out_shape=jax.ShapeDtypeStruct((out_pad, Bp), jnp.float32),
        grid=(Bp // tb,),
        in_specs=[pl.BlockSpec((K, tb), lambda i: (0, i)),     # batch-tiled x
                  const(w1t), const(b1t), const(w2t), const(b2t),
                  const(w3p), const(b3p)],                     # resident weights
        out_specs=pl.BlockSpec((out_pad, tb), lambda i: (0, i)),
        compiler_params=pltpu.CompilerParams(
            dimension_semantics=("parallel",),                 # megacore on v7x
            vmem_limit_bytes=vmem_limit),
    )(xtp, w1t, b1t, w2t, b2t, w3p, b3p)

    # Tiny [out_pad, Bp] slab -> [B, out_size]; negligible HBM traffic.
    return out[:out_size, :B].T


def init_params(key, input_size=2, hidden_sizes=(64, 64), output_size=3):
    """PyTorch nn.Linear-style init: U(-1/sqrt(fan_in), +1/sqrt(fan_in))."""
    sizes = [input_size, *hidden_sizes, output_size]
    params = {}
    for i, (fan_in, fan_out) in enumerate(zip(sizes[:-1], sizes[1:]), start=1):
        key, kw, kb = jax.random.split(key, 3)
        bound = 1.0 / jnp.sqrt(fan_in)
        params[f"w{i}"] = jax.random.uniform(
            kw, (fan_in, fan_out), jnp.float32, -bound, bound)
        params[f"b{i}"] = jax.random.uniform(
            kb, (1, fan_out), jnp.float32, -bound, bound)
    return params


def reference_forward(x, p):
    h1 = jnp.maximum(x @ p["w1"] + p["b1"], 0.0)
    h2 = jnp.maximum(h1 @ p["w2"] + p["b2"], 0.0)
    return jax.nn.sigmoid(h2 @ p["w3"] + p["b3"])


# TODO(synk): training loop (CrossEntropyLoss + SGD) and argmax predict() are
# host-side PyTorch utilities, not part of the fused forward kernel.

if __name__ == "__main__":
    key = jax.random.PRNGKey(0)
    key, kx = jax.random.split(key)

    B, INPUT, HIDDEN, OUTPUT = 300, 2, (64, 64), 3
    x = jax.random.normal(kx, (B, INPUT), jnp.float32)
    params = init_params(key, INPUT, HIDDEN, OUTPUT)

    # tb=128 is small on purpose: at this toy batch it exercises a 3-step
    # batch grid (incl. a padded tail tile).  Production default (tb=None)
    # picks up to 4096-wide lane tiles with >= 2 grid steps for megacore.
    out = perceptron_forward(x, params, tb=128)
    out = jax.block_until_ready(out)

    ref = reference_forward(x, params)
    assert out.shape == (B, OUTPUT), out.shape
    # MXU default precision on f32 operands => small deviation vs f32 ref.
    assert jnp.allclose(out, ref, atol=2e-2), float(jnp.max(jnp.abs(out - ref)))

    print("KERNEL_OK")
</pallas_src>

<mosaic_0001>
module attributes {stable_mosaic.version = 11 : i64} {
  func.func @mlp_kernel(%arg0: i32, %arg1: memref<2x128xf32, #tpu.memory_space<vmem>>, %arg2: memref<64x2xf32, #tpu.memory_space<vmem>>, %arg3: memref<64x1xf32, #tpu.memory_space<vmem>>, %arg4: memref<64x64xf32, #tpu.memory_space<vmem>>, %arg5: memref<64x1xf32, #tpu.memory_space<vmem>>, %arg6: memref<8x64xf32, #tpu.memory_space<vmem>>, %arg7: memref<8x1xf32, #tpu.memory_space<vmem>>, %arg8: memref<8x128xf32, #tpu.memory_space<vmem>>) attributes {dimension_semantics = [#tpu.dimension_semantics<parallel>], iteration_bounds = array<i64: 3>, scalar_prefetch = 0 : i64, scratch_operands = 0 : i64, tpu.core_type = #tpu.core_type<tc>, window_params = [{transform_indices = @transform_0, window_bounds = array<i64: 2, 128>}, {pipeline_mode = #tpu.pipeline_mode<synchronous>, transform_indices = @transform_1, window_bounds = array<i64: 64, 2>}, {pipeline_mode = #tpu.pipeline_mode<synchronous>, transform_indices = @transform_2, window_bounds = array<i64: 64, 1>}, {pipeline_mode = #tpu.pipeline_mode<synchronous>, transform_indices = @transform_3, window_bounds = array<i64: 64, 64>}, {pipeline_mode = #tpu.pipeline_mode<synchronous>, transform_indices = @transform_4, window_bounds = array<i64: 64, 1>}, {pipeline_mode = #tpu.pipeline_mode<synchronous>, transform_indices = @transform_5, window_bounds = array<i64: 8, 64>}, {pipeline_mode = #tpu.pipeline_mode<synchronous>, transform_indices = @transform_6, window_bounds = array<i64: 8, 1>}, {transform_indices = @transform_7, window_bounds = array<i64: 8, 128>}]} {
    %c0 = arith.constant 0 : index
    %c0_0 = arith.constant 0 : index
    %0 = vector.load %arg1[%c0, %c0_0] : memref<2x128xf32, #tpu.memory_space<vmem>>, vector<2x128xf32>
    %c0_1 = arith.constant 0 : index
    %c0_2 = arith.constant 0 : index
    %1 = vector.load %arg2[%c0_1, %c0_2] : memref<64x2xf32, #tpu.memory_space<vmem>>, vector<64x2xf32>
    %c0_3 = arith.constant 0 : index
    %c0_4 = arith.constant 0 : index
    %2 = vector.load %arg3[%c0_3, %c0_4] : memref<64x1xf32, #tpu.memory_space<vmem>>, vector<64x1xf32>
    %3 = vector.extract_strided_slice %1 {offsets = [0, 0], sizes = [64, 1], strides = [1, 1]} : vector<64x2xf32> to vector<64x1xf32>
    %4 = vector.extract_strided_slice %0 {offsets = [0, 0], sizes = [1, 128], strides = [1, 1]} : vector<2x128xf32> to vector<1x128xf32>
    %5 = vector.broadcast %3 : vector<64x1xf32> to vector<64x128xf32>
    %6 = vector.broadcast %4 : vector<1x128xf32> to vector<64x128xf32>
    %7 = arith.mulf %5, %6 : vector<64x128xf32>
    %8 = vector.broadcast %2 : vector<64x1xf32> to vector<64x128xf32>
    %9 = arith.addf %8, %7 : vector<64x128xf32>
    %10 = vector.extract_strided_slice %1 {offsets = [0, 1], sizes = [64, 1], strides = [1, 1]} : vector<64x2xf32> to vector<64x1xf32>
    %11 = vector.extract_strided_slice %0 {offsets = [1, 0], sizes = [1, 128], strides = [1, 1]} : vector<2x128xf32> to vector<1x128xf32>
    %12 = vector.broadcast %10 : vector<64x1xf32> to vector<64x128xf32>
    %13 = vector.broadcast %11 : vector<1x128xf32> to vector<64x128xf32>
    %14 = arith.mulf %12, %13 : vector<64x128xf32>
    %15 = arith.addf %9, %14 : vector<64x128xf32>
    %cst = arith.constant 0.000000e+00 : f32
    %16 = vector.broadcast %cst : f32 to vector<64x128xf32>
    %17 = arith.maximumf %15, %16 : vector<64x128xf32>
    %c0_5 = arith.constant 0 : index
    %c0_6 = arith.constant 0 : index
    %18 = vector.load %arg4[%c0_5, %c0_6] : memref<64x64xf32, #tpu.memory_space<vmem>>, vector<64x64xf32>
    %cst_7 = arith.constant dense<0.000000e+00> : vector<64x128xf32>
    %19 = tpu.matmul %18, %17, %cst_7 {dimension_numbers = #tpu.dot_dimension_numbers<[1], [0], [0], [1], [0, 0, 1, 1], [], []>} : vector<64x64xf32>, vector<64x128xf32>, vector<64x128xf32> -> vector<64x128xf32>
    %c0_8 = arith.constant 0 : index
    %c0_9 = arith.constant 0 : index
    %20 = vector.load %arg5[%c0_8, %c0_9] : memref<64x1xf32, #tpu.memory_space<vmem>>, vector<64x1xf32>
    %21 = vector.broadcast %20 : vector<64x1xf32> to vector<64x128xf32>
    %22 = arith.addf %19, %21 : vector<64x128xf32>
    %cst_10 = arith.constant 0.000000e+00 : f32
    %23 = vector.broadcast %cst_10 : f32 to vector<64x128xf32>
    %24 = arith.maximumf %22, %23 : vector<64x128xf32>
    %c0_11 = arith.constant 0 : index
    %c0_12 = arith.constant 0 : index
    %25 = vector.load %arg6[%c0_11, %c0_12] : memref<8x64xf32, #tpu.memory_space<vmem>>, vector<8x64xf32>
    %cst_13 = arith.constant dense<0.000000e+00> : vector<8x128xf32>
    %26 = tpu.matmul %25, %24, %cst_13 {dimension_numbers = #tpu.dot_dimension_numbers<[1], [0], [0], [1], [0, 0, 1, 1], [], []>} : vector<8x64xf32>, vector<64x128xf32>, vector<8x128xf32> -> vector<8x128xf32>
    %c0_14 = arith.constant 0 : index
    %c0_15 = arith.constant 0 : index
    %27 = vector.load %arg7[%c0_14, %c0_15] : memref<8x1xf32, #tpu.memory_space<vmem>>, vector<8x1xf32>
    %28 = vector.broadcast %27 : vector<8x1xf32> to vector<8x128xf32>
    %29 = arith.addf %26, %28 : vector<8x128xf32>
    %30 = arith.negf %29 : vector<8x128xf32>
    %31 = math.exp %30 : vector<8x128xf32>
    %cst_16 = arith.constant 1.000000e+00 : f32
    %32 = vector.broadcast %cst_16 : f32 to vector<8x128xf32>
    %33 = arith.addf %32, %31 : vector<8x128xf32>
    %34 = arith.divf %32, %33 : vector<8x128xf32>
    %c0_17 = arith.constant 0 : index
    %c0_18 = arith.constant 0 : index
    %35 = vector.load %arg8[%c0_17, %c0_18] : memref<8x128xf32, #tpu.memory_space<vmem>>, vector<8x128xf32>
    tpu.vector_store %arg8[%c0_17, %c0_18], %34 {strides = array<i32>} : memref<8x128xf32, #tpu.memory_space<vmem>>, vector<8x128xf32>,
    return
  }
  func.func @transform_0(%arg0: i32) -> (i32, i32) {
    %c0_i32 = arith.constant 0 : i32
    %c0_i32_0 = arith.constant 0 : i32
    return %c0_i32, %arg0 : i32, i32
  }
  func.func @transform_1(%arg0: i32) -> (i32, i32) {
    %c0_i32 = arith.constant 0 : i32
    %c0_i32_0 = arith.constant 0 : i32
    %c0_i32_1 = arith.constant 0 : i32
    return %c0_i32, %c0_i32_0 : i32, i32
  }
  func.func @transform_2(%arg0: i32) -> (i32, i32) {
    %c0_i32 = arith.constant 0 : i32
    %c0_i32_0 = arith.constant 0 : i32
    %c0_i32_1 = arith.constant 0 : i32
    return %c0_i32, %c0_i32_0 : i32, i32
  }
  func.func @transform_3(%arg0: i32) -> (i32, i32) {
    %c0_i32 = arith.constant 0 : i32
    %c0_i32_0 = arith.constant 0 : i32
    %c0_i32_1 = arith.constant 0 : i32
    return %c0_i32, %c0_i32_0 : i32, i32
  }
  func.func @transform_4(%arg0: i32) -> (i32, i32) {
    %c0_i32 = arith.constant 0 : i32
    %c0_i32_0 = arith.constant 0 : i32
    %c0_i32_1 = arith.constant 0 : i32
    return %c0_i32, %c0_i32_0 : i32, i32
  }
  func.func @transform_5(%arg0: i32) -> (i32, i32) {
    %c0_i32 = arith.constant 0 : i32
    %c0_i32_0 = arith.constant 0 : i32
    %c0_i32_1 = arith.constant 0 : i32
    return %c0_i32, %c0_i32_0 : i32, i32
  }
  func.func @transform_6(%arg0: i32) -> (i32, i32) {
    %c0_i32 = arith.constant 0 : i32
    %c0_i32_0 = arith.constant 0 : i32
    %c0_i32_1 = arith.constant 0 : i32
    return %c0_i32, %c0_i32_0 : i32, i32
  }
  func.func @transform_7(%arg0: i32) -> (i32, i32) {
    %c0_i32 = arith.constant 0 : i32
    %c0_i32_0 = arith.constant 0 : i32
    return %c0_i32, %arg0 : i32, i32
  }
}

</mosaic_0001>

<llo_original>
// kernel: tpu_custom_call.1
$region0: #{tpu_custom_call.1}
  #allocation0 [shape = 'u32[]', space=smem, size = 0x4, offset = 0x4, fixed_abs, tag = 'smem constant byte address 0x4 - core index']
  #allocation1 [shape = 'u32[144,128]{1,0:T(1,128)}', space=vmem, size = 0x12000, scoped, tag = 'internal scratch']
  %s0 = inlined_call_operand.vmem [shape: f32[2,384], index: 0, kind: input, shape index: {}]
  %s1 = inlined_call_operand.vmem [shape: f32[64,2], index: 1, kind: input, shape index: {}]
  %s2 = inlined_call_operand.vmem [shape: f32[64,1], index: 2, kind: input, shape index: {}]
  %s3 = inlined_call_operand.vmem [shape: f32[64,64], index: 3, kind: input, shape index: {}]
  %s4 = inlined_call_operand.vmem [shape: f32[64,1], index: 4, kind: input, shape index: {}]
  %s5 = inlined_call_operand.vmem [shape: f32[8,64], index: 5, kind: input, shape index: {}]
  %s6 = inlined_call_operand.vmem [shape: f32[8,1], index: 6, kind: input, shape index: {}]
  %s7 = inlined_call_operand.hbm [shape: f32[8,384], index: 7, kind: output, shape index: {}]
  %s8 = sld [smem:[#allocation0]]
  $region61: #{tpu_custom_call.1} parent=0
    _
  %s10 = ssub.s32 1, %s8
  %s11 = scalar_select 0, %s10, %s8
  $region1: #{tpu_custom_call.1} parent=0
    #allocation2 [shape = 'u8[8192]{0}', space=vmem, size = 0x2000, scoped, tag = 'output window, operand 0']
    #allocation3 [shape = 's32[2]{0}', space=sflag, size = 0x8, scoped, tag = 'scoped memory for tpu_custom_call.1']
    %12 = vsyncpa [#allocation3], 0
    %s13 = scalar_lea.sflag [#allocation3], 1
    %14 = vsyncpa %s13, 0
    loop: start=0, step=1, limit=5
    $region2: #{tpu_custom_call.1} parent=1 // loop_pre_header
      _
    $region3: #{tpu_custom_call.1} parent=1 // loop_header
      %s16 = sphi 0, %s20
      %p17 = scmp.ge.s32.totalorder %s16, 5
      %s26 = sphi 0, %s28
      %s29 = sphi 0, %s26
      %s30 = sphi 0, %s29
      %s46 = sphi 0, %s30
      %s50 = sphi 0, %s50
      %s52 = sphi 0, %s50
      %s53 = sphi 0, %s52
      %s67 = sphi 0, %s53
      %s71 = sphi 0, %s71
      %s73 = sphi 0, %s71
      %s74 = sphi 0, %s73
      %s88 = sphi 0, %s74
      %s92 = sphi 0, %s92
      %s94 = sphi 0, %s92
      %s95 = sphi 0, %s94
      %s109 = sphi 0, %s95
      %s113 = sphi 0, %s113
      %s115 = sphi 0, %s113
      %s116 = sphi 0, %s115
      %s130 = sphi 0, %s116
      %s134 = sphi 0, %s134
      %s136 = sphi 0, %s134
      %s137 = sphi 0, %s136
      %s151 = sphi 0, %s137
      %s155 = sphi 0, %s155
      %s157 = sphi 0, %s155
      %s158 = sphi 0, %s157
      %s172 = sphi 0, %s158
      %s178 = sphi 0, %s180
      %s181 = sphi 0, %s178
      %s182 = sphi 0, %s181
      %s198 = sphi 0, %s182
    $region4: #{tpu_custom_call.1} parent=1 // loop_header_branch
      %19 = sbr.rel (%p17) target = $region8
    $region5: #{tpu_custom_call.1} parent=1 // loop_body
      %s21 = ssub.s32 %s16, 1
      %s22 = ssub.s32 %s16, 2
      %s23 = sadd.s32 %s16, 1
      %s24 = ssub.s32 %s16, %s23
      %p25 = scmp.eq.s32.totalorder %s24, 0
      %s27 = sadd.s32 %s26, 1
      %s28 = scalar_select %p25, %s26, %s27
      %p31 = pneg %p25
      %p32 = scmp.eq.s32.totalorder %s16, 2
      %p33 = por %p31, %p32
      %p34 = scmp.ne.s32.totalorder %s26, %s29
      %p35 = scmp.eq.s32.totalorder %s16, 0
      %p36 = por %p34, %p35
      %p37 = scmp.ne.s32.totalorder %s26, %s29
      %p38 = scmp.eq.s32.totalorder %s21, 2
      %p39 = por %p37, %p38
      %p40 = scmp.ne.s32.totalorder %s29, %s30
      %p41 = scmp.eq.s32.totalorder %s21, 0
      %p42 = por %p40, %p41
      %p43 = scmp.ne.s32.totalorder %s29, %s30
      %p44 = scmp.eq.s32.totalorder %s22, 2
      %p45 = por %p43, %p44
      %p47 = scmp.ne.s32.totalorder %s30, %s46
      %p48 = scmp.eq.s32.totalorder %s22, 0
      %p49 = por %p47, %p48
      %s51 = sadd.s32 %s50, 1
      %p54 = scmp.eq.s32.totalorder %s16, 2
      %p55 = scmp.ne.s32.totalorder %s50, %s52
      %p56 = scmp.eq.s32.totalorder %s16, 0
      %p57 = por %p55, %p56
      %p58 = scmp.ne.s32.totalorder %s50, %s52
      %p59 = scmp.eq.s32.totalorder %s21, 2
      %p60 = por %p58, %p59
      %p61 = scmp.ne.s32.totalorder %s52, %s53
      %p62 = scmp.eq.s32.totalorder %s21, 0
      %p63 = por %p61, %p62
      %p64 = scmp.ne.s32.totalorder %s52, %s53
      %p65 = scmp.eq.s32.totalorder %s22, 2
      %p66 = por %p64, %p65
      %p68 = scmp.ne.s32.totalorder %s53, %s67
      %p69 = scmp.eq.s32.totalorder %s22, 0
      %p70 = por %p68, %p69
      %s72 = sadd.s32 %s71, 1
      %p75 = scmp.eq.s32.totalorder %s16, 2
      %p76 = scmp.ne.s32.totalorder %s71, %s73
      %p77 = scmp.eq.s32.totalorder %s16, 0
      %p78 = por %p76, %p77
      %p79 = scmp.ne.s32.totalorder %s71, %s73
      %p80 = scmp.eq.s32.totalorder %s21, 2
      %p81 = por %p79, %p80
      %p82 = scmp.ne.s32.totalorder %s73, %s74
      %p83 = scmp.eq.s32.totalorder %s21, 0
      %p84 = por %p82, %p83
      %p85 = scmp.ne.s32.totalorder %s73, %s74
      %p86 = scmp.eq.s32.totalorder %s22, 2
      %p87 = por %p85, %p86
      %p89 = scmp.ne.s32.totalorder %s74, %s88
      %p90 = scmp.eq.s32.totalorder %s22, 0
      %p91 = por %p89, %p90
      %s93 = sadd.s32 %s92, 1
      %p96 = scmp.eq.s32.totalorder %s16, 2
      %p97 = scmp.ne.s32.totalorder %s92, %s94
      %p98 = scmp.eq.s32.totalorder %s16, 0
      %p99 = por %p97, %p98
      %p100 = scmp.ne.s32.totalorder %s92, %s94
      %p101 = scmp.eq.s32.totalorder %s21, 2
      %p102 = por %p100, %p101
      %p103 = scmp.ne.s32.totalorder %s94, %s95
      %p104 = scmp.eq.s32.totalorder %s21, 0
      %p105 = por %p103, %p104
      %p106 = scmp.ne.s32.totalorder %s94, %s95
      %p107 = scmp.eq.s32.totalorder %s22, 2
      %p108 = por %p106, %p107
      %p110 = scmp.ne.s32.totalorder %s95, %s109
      %p111 = scmp.eq.s32.totalorder %s22, 0
      %p112 = por %p110, %p111
      %s114 = sadd.s32 %s113, 1
      %p117 = scmp.eq.s32.totalorder %s16, 2
      %p118 = scmp.ne.s32.totalorder %s113, %s115
      %p119 = scmp.eq.s32.totalorder %s16, 0
      %p120 = por %p118, %p119
      %p121 = scmp.ne.s32.totalorder %s113, %s115
      %p122 = scmp.eq.s32.totalorder %s21, 2
      %p123 = por %p121, %p122
      %p124 = scmp.ne.s32.totalorder %s115, %s116
      %p125 = scmp.eq.s32.totalorder %s21, 0
      %p126 = por %p124, %p125
      %p127 = scmp.ne.s32.totalorder %s115, %s116
      %p128 = scmp.eq.s32.totalorder %s22, 2
      %p129 = por %p127, %p128
      %p131 = scmp.ne.s32.totalorder %s116, %s130
      %p132 = scmp.eq.s32.totalorder %s22, 0
      %p133 = por %p131, %p132
      %s135 = sadd.s32 %s134, 1
      %p138 = scmp.eq.s32.totalorder %s16, 2
      %p139 = scmp.ne.s32.totalorder %s134, %s136
      %p140 = scmp.eq.s32.totalorder %s16, 0
      %p141 = por %p139, %p140
      %p142 = scmp.ne.s32.totalorder %s134, %s136
      %p143 = scmp.eq.s32.totalorder %s21, 2
      %p144 = por %p142, %p143
      %p145 = scmp.ne.s32.totalorder %s136, %s137
      %p146 = scmp.eq.s32.totalorder %s21, 0
      %p147 = por %p145, %p146
      %p148 = scmp.ne.s32.totalorder %s136, %s137
      %p149 = scmp.eq.s32.totalorder %s22, 2
      %p150 = por %p148, %p149
      %p152 = scmp.ne.s32.totalorder %s137, %s151
      %p153 = scmp.eq.s32.totalorder %s22, 0
      %p154 = por %p152, %p153
      %s156 = sadd.s32 %s155, 1
      %p159 = scmp.eq.s32.totalorder %s16, 2
      %p160 = scmp.ne.s32.totalorder %s155, %s157
      %p161 = scmp.eq.s32.totalorder %s16, 0
      %p162 = por %p160, %p161
      %p163 = scmp.ne.s32.totalorder %s155, %s157
      %p164 = scmp.eq.s32.totalorder %s21, 2
      %p165 = por %p163, %p164
      %p166 = scmp.ne.s32.totalorder %s157, %s158
      %p167 = scmp.eq.s32.totalorder %s21, 0
      %p168 = por %p166, %p167
      %p169 = scmp.ne.s32.totalorder %s157, %s158
      %p170 = scmp.eq.s32.totalorder %s22, 2
      %p171 = por %p169, %p170
      %p173 = scmp.ne.s32.totalorder %s158, %s172
      %p174 = scmp.eq.s32.totalorder %s22, 0
      %p175 = por %p173, %p174
      %s176 = ssub.s32 %s16, %s23
      %p177 = scmp.eq.s32.totalorder %s176, 0
      %s179 = sadd.s32 %s178, 1
      %s180 = scalar_select %p177, %s178, %s179
      %p183 = pneg %p177
      %p184 = scmp.eq.s32.totalorder %s16, 2
      %p185 = por %p183, %p184
      %p186 = scmp.ne.s32.totalorder %s178, %s181
      %p187 = scmp.eq.s32.totalorder %s16, 0
      %p188 = por %p186, %p187
      %p189 = scmp.ne.s32.totalorder %s178, %s181
      %p190 = scmp.eq.s32.totalorder %s21, 2
      %p191 = por %p189, %p190
      %p192 = scmp.ne.s32.totalorder %s181, %s182
      %p193 = scmp.eq.s32.totalorder %s21, 0
      %p194 = por %p192, %p193
      %p195 = scmp.ne.s32.totalorder %s181, %s182
      %p196 = scmp.eq.s32.totalorder %s22, 2
      %p197 = por %p195, %p196
      %p199 = scmp.ne.s32.totalorder %s182, %s198
      %p200 = scmp.eq.s32.totalorder %s22, 0
      %p201 = por %p199, %p200
      %p202 = scmp.le.s32.totalorder 1, %s16
      %p203 = scmp.lt.s32.totalorder %s16, 4
      %p204 = pnand %p202, %p203
      %p205 = pneg %p204
      // Predicated region
      $region9: #{tpu_custom_call.1} parent=5 // pred_check
        _
      $region10: #{tpu_custom_call.1} parent=5 // pred_check_branch
        %207 = sbr.rel (%p204) target = $region12
      $region11: #{tpu_custom_call.1} parent=5 // pred_region
        %s208 = ssub.s32 %s16, 1
        // Predicated region
        $region13: #{tpu_custom_call.1} parent=11 // pred_check
          %p209 = pneg %p63
        $region14: #{tpu_custom_call.1} parent=11 // pred_check_branch
          %211 = sbr.rel (%p209) target = $region16
        $region15: #{tpu_custom_call.1} parent=11 // pred_region
          _
        $region16: #{tpu_custom_call.1} parent=11 // pred_fallthru
          _
        // Predicated region
        $region17: #{tpu_custom_call.1} parent=11 // pred_check
          %p212 = pneg %p84
        $region18: #{tpu_custom_call.1} parent=11 // pred_check_branch
          %214 = sbr.rel (%p212) target = $region20
        $region19: #{tpu_custom_call.1} parent=11 // pred_region
          _
        $region20: #{tpu_custom_call.1} parent=11 // pred_fallthru
          _
        // Predicated region
        $region21: #{tpu_custom_call.1} parent=11 // pred_check
          %p215 = pneg %p105
        $region22: #{tpu_custom_call.1} parent=11 // pred_check_branch
          %217 = sbr.rel (%p215) target = $region24
        $region23: #{tpu_custom_call.1} parent=11 // pred_region
          _
        $region24: #{tpu_custom_call.1} parent=11 // pred_fallthru
          _
        // Predicated region
        $region25: #{tpu_custom_call.1} parent=11 // pred_check
          %p218 = pneg %p126
        $region26: #{tpu_custom_call.1} parent=11 // pred_check_branch
          %220 = sbr.rel (%p218) target = $region28
        $region27: #{tpu_custom_call.1} parent=11 // pred_region
          _
        $region28: #{tpu_custom_call.1} parent=11 // pred_fallthru
          _
        // Predicated region
        $region29: #{tpu_custom_call.1} parent=11 // pred_check
          %p221 = pneg %p147
        $region30: #{tpu_custom_call.1} parent=11 // pred_check_branch
          %223 = sbr.rel (%p221) target = $region32
        $region31: #{tpu_custom_call.1} parent=11 // pred_region
          _
        $region32: #{tpu_custom_call.1} parent=11 // pred_fallthru
          _
        // Predicated region
        $region33: #{tpu_custom_call.1} parent=11 // pred_check
          %p224 = pneg %p168
        $region34: #{tpu_custom_call.1} parent=11 // pred_check_branch
          %226 = sbr.rel (%p224) target = $region36
        $region35: #{tpu_custom_call.1} parent=11 // pred_region
          _
        $region36: #{tpu_custom_call.1} parent=11 // pred_fallthru
          _
      $region12: #{tpu_custom_call.1} parent=5 // pred_fallthru
        _
      %p227 = scmp.lt.s32.totalorder %s16, 3
      // Predicated region
      $region37: #{tpu_custom_call.1} parent=5 // pred_check
        %p228 = pneg %p227
      $region38: #{tpu_custom_call.1} parent=5 // pred_check_branch
        %230 = sbr.rel (%p228) target = $region40
      $region39: #{tpu_custom_call.1} parent=5 // pred_region
        // Predicated region
        $region41: #{tpu_custom_call.1} parent=39 // pred_check
          %p231 = pneg %p36
        $region42: #{tpu_custom_call.1} parent=39 // pred_check_branch
          %233 = sbr.rel (%p231) target = $region44
        $region43: #{tpu_custom_call.1} parent=39 // pred_region
          %p234 = scmp.lt.s32.totalorder %s16, 2
          %s235 = scalar_select %p234, %s16, 2
          %s236 = smul.addr %s235, 2
          %s237 = scalar_lea.vmem %s0, %s236
        $region44: #{tpu_custom_call.1} parent=39 // pred_fallthru
          _
      $region40: #{tpu_custom_call.1} parent=5 // pred_fallthru
        _
      %p238 = scmp.le.s32.totalorder 1, %s16
      %p239 = scmp.lt.s32.totalorder %s16, 4
      %p240 = pnand %p238, %p239
      %p241 = pneg %p240
      // Predicated region
      $region45: #{tpu_custom_call.1} parent=5 // pred_check
        _
      $region46: #{tpu_custom_call.1} parent=5 // pred_check_branch
        %243 = sbr.rel (%p240) target = $region48
      $region47: #{tpu_custom_call.1} parent=5 // pred_region
        %s244 = ssub.s32 %s16, 1
        %p245 = scmp.lt.s32.totalorder %s21, 2
        %s246 = scalar_select %p245, %s21, 2
        %s247 = smul.addr %s246, 2
        %s248 = scalar_lea.vmem %s0, %s247
        %p249 = pneg %p42
        %p250 = pneg %p39
        %p251 = pneg %p63
        %p252 = pneg %p60
        %p253 = pneg %p84
        %p254 = pneg %p81
        %p255 = pneg %p105
        %p256 = pneg %p102
        %p257 = pneg %p126
        %p258 = pneg %p123
        %p259 = pneg %p147
        %p260 = pneg %p144
        %p261 = pneg %p168
        %p262 = pneg %p165
        %p263 = pneg %p194
        %p264 = pneg %p191
        %s265 = sand.u32 %s181, 1
        %s266 = scalar_lea.sflag [#allocation3], %s265
        %s267 = sand.u32 %s181, 1
        %s268 = smul.addr %s267, 8
        %s269 = scalar_lea.vmem [#allocation2], %s268
        %p270 = scmp.lt.s32.totalorder %s21, 2
        %s271 = scalar_select %p270, %s21, 2
        %s272 = smul.addr %s271, 2
        %s273 = scalar_lea.vmem %s0, %s272
        %v274 = vld [vmem:[%s273] sm:$0x3]
        %v275 = vld [vmem:[%s1] sm:$0xff]
        %v276 = vld [vmem:[%s1 + $0x8] sm:$0xff]
        %v277 = vld [vmem:[%s1 + $0x10] sm:$0xff]
        %v278 = vld [vmem:[%s1 + $0x18] sm:$0xff]
        %v279 = vld [vmem:[%s1 + $0x20] sm:$0xff]
        %v280 = vld [vmem:[%s1 + $0x28] sm:$0xff]
        %v281 = vld [vmem:[%s1 + $0x30] sm:$0xff]
        %v282 = vld [vmem:[%s1 + $0x38] sm:$0xff]
        %v283 = vld [vmem:[%s2] sm:$0xff]
        %v284 = vld [vmem:[%s2 + $0x8] sm:$0xff]
        %v285 = vld [vmem:[%s2 + $0x10] sm:$0xff]
        %v286 = vld [vmem:[%s2 + $0x18] sm:$0xff]
        %v287 = vld [vmem:[%s2 + $0x20] sm:$0xff]
        %v288 = vld [vmem:[%s2 + $0x28] sm:$0xff]
        %v289 = vld [vmem:[%s2 + $0x30] sm:$0xff]
        %v290 = vld [vmem:[%s2 + $0x38] sm:$0xff]
        %292 = vset.pattern.permute.xlu0 0
        %293 = vperm.xlu0 %292, %v275
        %v294 = vpop.permute.xlu0 %293
        %297 = vset.pattern.permute.xlu0 0
        %298 = vperm.xlu0 %297, %v276
        %v299 = vpop.permute.xlu0 %298
        %302 = vset.pattern.permute.xlu0 0
        %303 = vperm.xlu0 %302, %v277
        %v304 = vpop.permute.xlu0 %303
        %307 = vset.pattern.permute.xlu0 0
        %308 = vperm.xlu0 %307, %v278
        %v309 = vpop.permute.xlu0 %308
        %312 = vset.pattern.permute.xlu0 0
        %313 = vperm.xlu0 %312, %v279
        %v314 = vpop.permute.xlu0 %313
        %317 = vset.pattern.permute.xlu0 0
        %318 = vperm.xlu0 %317, %v280
        %v319 = vpop.permute.xlu0 %318
        %322 = vset.pattern.permute.xlu0 0
        %323 = vperm.xlu0 %322, %v281
        %v324 = vpop.permute.xlu0 %323
        %327 = vset.pattern.permute.xlu0 0
        %328 = vperm.xlu0 %327, %v282
        %v329 = vpop.permute.xlu0 %328
        %v331 = vlaneseq
        %v332 = vshrl.u32 %v331, 7
        %v333 = vsub.s32 0, %v332
        %v334 = vrot.slane %v274, %v333
        %v335 = vmul.f32 %v294, %v334
        %v336 = vmul.f32 %v299, %v334
        %v337 = vmul.f32 %v304, %v334
        %v338 = vmul.f32 %v309, %v334
        %v339 = vmul.f32 %v314, %v334
        %v340 = vmul.f32 %v319, %v334
        %v341 = vmul.f32 %v324, %v334
        %v342 = vmul.f32 %v329, %v334
        %344 = vset.pattern.permute.xlu0 0
        %345 = vperm.xlu0 %344, %v283
        %v346 = vpop.permute.xlu0 %345
        %349 = vset.pattern.permute.xlu0 0
        %350 = vperm.xlu0 %349, %v284
        %v351 = vpop.permute.xlu0 %350
        %354 = vset.pattern.permute.xlu0 0
        %355 = vperm.xlu0 %354, %v285
        %v356 = vpop.permute.xlu0 %355
        %359 = vset.pattern.permute.xlu0 0
        %360 = vperm.xlu0 %359, %v286
        %v361 = vpop.permute.xlu0 %360
        %364 = vset.pattern.permute.xlu0 0
        %365 = vperm.xlu0 %364, %v287
        %v366 = vpop.permute.xlu0 %365
        %369 = vset.pattern.permute.xlu0 0
        %370 = vperm.xlu0 %369, %v288
        %v371 = vpop.permute.xlu0 %370
        %374 = vset.pattern.permute.xlu0 0
        %375 = vperm.xlu0 %374, %v289
        %v376 = vpop.permute.xlu0 %375
        %379 = vset.pattern.permute.xlu0 0
        %380 = vperm.xlu0 %379, %v290
        %v381 = vpop.permute.xlu0 %380
        %v383 = vadd.f32 %v346, %v335
        %v384 = vadd.f32 %v351, %v336
        %v385 = vadd.f32 %v356, %v337
        %v386 = vadd.f32 %v361, %v338
        %v387 = vadd.f32 %v366, %v339
        %v388 = vadd.f32 %v371, %v340
        %v389 = vadd.f32 %v376, %v341
        %v390 = vadd.f32 %v381, %v342
        %391 = vset.pattern.permute.xlu0 1
        %392 = vperm.xlu0 %391, %v275
        %v393 = vpop.permute.xlu0 %392
        %395 = vset.pattern.permute.xlu0 1
        %396 = vperm.xlu0 %395, %v276
        %v397 = vpop.permute.xlu0 %396
        %399 = vset.pattern.permute.xlu0 1
        %400 = vperm.xlu0 %399, %v277
        %v401 = vpop.permute.xlu0 %400
        %403 = vset.pattern.permute.xlu0 1
        %404 = vperm.xlu0 %403, %v278
        %v405 = vpop.permute.xlu0 %404
        %407 = vset.pattern.permute.xlu0 1
        %408 = vperm.xlu0 %407, %v279
        %v409 = vpop.permute.xlu0 %408
        %411 = vset.pattern.permute.xlu0 1
        %412 = vperm.xlu0 %411, %v280
        %v413 = vpop.permute.xlu0 %412
        %415 = vset.pattern.permute.xlu0 1
        %416 = vperm.xlu0 %415, %v281
        %v417 = vpop.permute.xlu0 %416
        %419 = vset.pattern.permute.xlu0 1
        %420 = vperm.xlu0 %419, %v282
        %v421 = vpop.permute.xlu0 %420
        %v423 = vlaneseq
        %v424 = vshrl.u32 %v423, 7
        %v425 = vsub.s32 1, %v424
        %v426 = vrot.slane %v274, %v425
        %v427 = vmul.f32 %v393, %v426
        %v428 = vmul.f32 %v397, %v426
        %v429 = vmul.f32 %v401, %v426
        %v430 = vmul.f32 %v405, %v426
        %v431 = vmul.f32 %v409, %v426
        %v432 = vmul.f32 %v413, %v426
        %v433 = vmul.f32 %v417, %v426
        %v434 = vmul.f32 %v421, %v426
        %v435 = vadd.f32 %v383, %v427
        %v436 = vadd.f32 %v384, %v428
        %v437 = vadd.f32 %v385, %v429
        %v438 = vadd.f32 %v386, %v430
        %v439 = vadd.f32 %v387, %v431
        %v440 = vadd.f32 %v388, %v432
        %v441 = vadd.f32 %v389, %v433
        %v442 = vadd.f32 %v390, %v434
        %v443 = vmax.f32 %v435, 0.0
        %v444 = vmax.f32 %v436, 0.0
        %v445 = vmax.f32 %v437, 0.0
        %v446 = vmax.f32 %v438, 0.0
        %v447 = vmax.f32 %v439, 0.0
        %v448 = vmax.f32 %v440, 0.0
        %v449 = vmax.f32 %v441, 0.0
        %v450 = vmax.f32 %v442, 0.0
        %v451 = vld [vmem:[%s3] sm:$0xff]
        %v452 = vld [vmem:[%s3 + $0x8] sm:$0xff]
        %v453 = vld [vmem:[%s3 + $0x10] sm:$0xff]
        %v454 = vld [vmem:[%s3 + $0x18] sm:$0xff]
        %v455 = vld [vmem:[%s3 + $0x20] sm:$0xff]
        %v456 = vld [vmem:[%s3 + $0x28] sm:$0xff]
        %v457 = vld [vmem:[%s3 + $0x30] sm:$0xff]
        %v458 = vld [vmem:[%s3 + $0x38] sm:$0xff]
        %v459 = vld [vmem:[%s4] sm:$0xff]
        %v460 = vld [vmem:[%s4 + $0x8] sm:$0xff]
        %v461 = vld [vmem:[%s4 + $0x10] sm:$0xff]
        %v462 = vld [vmem:[%s4 + $0x18] sm:$0xff]
        %v463 = vld [vmem:[%s4 + $0x20] sm:$0xff]
        %v464 = vld [vmem:[%s4 + $0x28] sm:$0xff]
        %v465 = vld [vmem:[%s4 + $0x30] sm:$0xff]
        %v466 = vld [vmem:[%s4 + $0x38] sm:$0xff]
        %468 = vset.pattern.permute.xlu0 0
        %469 = vperm.xlu0 %468, %v459
        %v470 = vpop.permute.xlu0 %469
        %473 = vset.pattern.permute.xlu0 0
        %474 = vperm.xlu0 %473, %v460
        %v475 = vpop.permute.xlu0 %474
        %478 = vset.pattern.permute.xlu0 0
        %479 = vperm.xlu0 %478, %v461
        %v480 = vpop.permute.xlu0 %479
        %483 = vset.pattern.permute.xlu0 0
        %484 = vperm.xlu0 %483, %v462
        %v485 = vpop.permute.xlu0 %484
        %488 = vset.pattern.permute.xlu0 0
        %489 = vperm.xlu0 %488, %v463
        %v490 = vpop.permute.xlu0 %489
        %493 = vset.pattern.permute.xlu0 0
        %494 = vperm.xlu0 %493, %v464
        %v495 = vpop.permute.xlu0 %494
        %498 = vset.pattern.permute.xlu0 0
        %499 = vperm.xlu0 %498, %v465
        %v500 = vpop.permute.xlu0 %499
        %503 = vset.pattern.permute.xlu0 0
        %504 = vperm.xlu0 %503, %v466
        %v505 = vpop.permute.xlu0 %504
        %vm507 = vcmask 523264
        %v509 = vsel %vm507, %v451, 0
        %v512 = vsel %vm507, %v452, 0
        %v515 = vsel %vm507, %v453, 0
        %v518 = vsel %vm507, %v454, 0
        %v521 = vsel %vm507, %v455, 0
        %v524 = vsel %vm507, %v456, 0
        %v527 = vsel %vm507, %v457, 0
        %v530 = vsel %vm507, %v458, 0
        %532 = vmatprep.subr.mxu0 0.0
        %533 = vmatpush1.msra.mxu0 0.0
        %534 = vmatprep.subr.mxu0 0.0
        %535 = vmatpush1.msra.mxu0 0.0
        %536 = vmatprep.subr.mxu0 0.0
        %537 = vmatpush1.msra.mxu0 0.0
        %538 = vmatprep.subr.mxu0 0.0
        %539 = vmatpush1.msra.mxu0 0.0
        %540 = vmatprep.subr.mxu0 0.0
        %541 = vmatpush1.msra.mxu0 0.0
        %542 = vmatprep.subr.mxu0 0.0
        %543 = vmatpush1.msra.mxu0 0.0
        %544 = vmatprep.subr.mxu0 0.0
        %545 = vmatpush1.msra.mxu0 0.0
        %546 = vmatprep.subr.mxu0 0.0
        %547 = vmatpush1.msra.mxu0 0.0
        %548 = vmatprep.subr.mxu0 0.0
        %549 = vmatpush1.msra.mxu0 %v450
        %550 = vmatprep.subr.mxu0 0.0
        %551 = vmatpush1.msra.mxu0 %v449
        %552 = vmatprep.subr.mxu0 0.0
        %553 = vmatpush1.msra.mxu0 %v448
        %554 = vmatprep.subr.mxu0 0.0
        %555 = vmatpush1.msra.mxu0 %v447
        %556 = vmatprep.subr.mxu0 0.0
        %557 = vmatpush1.msra.mxu0 %v446
        %558 = vmatprep.subr.mxu0 0.0
        %559 = vmatpush1.msra.mxu0 %v445
        %560 = vmatprep.subr.mxu0 0.0
        %561 = vmatpush1.msra.mxu0 %v444
        %562 = vmatprep.subr.mxu0 0.0
        %563 = vmatpush1.msra.mxu0 %v443
        %564 = vmatprep.subr.mxu0 0.0
        %565 = vmatpush2.msra.mxu0 0.0
        %566 = vmatprep.subr.mxu0 0.0
        %567 = vmatpush2.msra.mxu0 0.0
        %568 = vmatprep.subr.mxu0 0.0
        %569 = vmatpush2.msra.mxu0 0.0
        %570 = vmatprep.subr.mxu0 0.0
        %571 = vmatpush2.msra.mxu0 0.0
        %572 = vmatprep.subr.mxu0 0.0
        %573 = vmatpush2.msra.mxu0 0.0
        %574 = vmatprep.subr.mxu0 0.0
        %575 = vmatpush2.msra.mxu0 0.0
        %576 = vmatprep.subr.mxu0 0.0
        %577 = vmatpush2.msra.mxu0 0.0
        %578 = vmatprep.subr.mxu0 0.0
        %579 = vmatpush2.msra.mxu0 0.0
        %580 = vmatprep.subr.mxu0 0.0
        %581 = vmatpush2.msra.mxu0 0.0
        %582 = vmatprep.subr.mxu0 0.0
        %583 = vmatpush2.msra.mxu0 0.0
        %584 = vmatprep.subr.mxu0 0.0
        %585 = vmatpush2.msra.mxu0 0.0
        %586 = vmatprep.subr.mxu0 0.0
        %587 = vmatpush2.msra.mxu0 0.0
        %588 = vmatprep.subr.mxu0 0.0
        %589 = vmatpush2.msra.mxu0 0.0
        %590 = vmatprep.subr.mxu0 0.0
        %591 = vmatpush2.msra.mxu0 0.0
        %592 = vmatprep.subr.mxu0 0.0
        %593 = vmatpush2.msra.mxu0 0.0
        %594 = vmatprep.subr.mxu0 0.0
        %595 = vmatpush2.msra.mxu0 0.0
        %596 = vmatprep.mubr.f32.mxu0 0.0
        %597 = vmatmul.mubr.f32.gmra.mxu0 %v509
        %v598 = vpop.f32.mrf.mxu0
        %v599 = vadd.f32 %v470, %v598
        %v600 = vpop.f32.mrf.mxu0
        %601 = vmatprep.mubr.f32.mxu0 0.0
        %602 = vmatmul.mubr.f32.gmra.mxu0 %v512
        %v603 = vpop.f32.mrf.mxu0
        %v604 = vadd.f32 %v475, %v603
        %v605 = vpop.f32.mrf.mxu0
        %606 = vmatprep.mubr.f32.mxu0 0.0
        %607 = vmatmul.mubr.f32.gmra.mxu0 %v515
        %v608 = vpop.f32.mrf.mxu0
        %v609 = vadd.f32 %v480, %v608
        %v610 = vpop.f32.mrf.mxu0
        %611 = vmatprep.mubr.f32.mxu0 0.0
        %612 = vmatmul.mubr.f32.gmra.mxu0 %v518
        %v613 = vpop.f32.mrf.mxu0
        %v614 = vadd.f32 %v485, %v613
        %v615 = vpop.f32.mrf.mxu0
        %616 = vmatprep.mubr.f32.mxu0 0.0
        %617 = vmatmul.mubr.f32.gmra.mxu0 %v521
        %v618 = vpop.f32.mrf.mxu0
        %v619 = vadd.f32 %v490, %v618
        %v620 = vpop.f32.mrf.mxu0
        %621 = vmatprep.mubr.f32.mxu0 0.0
        %622 = vmatmul.mubr.f32.gmra.mxu0 %v524
        %v623 = vpop.f32.mrf.mxu0
        %v624 = vadd.f32 %v495, %v623
        %v625 = vpop.f32.mrf.mxu0
        %626 = vmatprep.mubr.f32.mxu0 0.0
        %627 = vmatmul.mubr.f32.gmra.mxu0 %v527
        %v628 = vpop.f32.mrf.mxu0
        %v629 = vadd.f32 %v500, %v628
        %v630 = vpop.f32.mrf.mxu0
        %631 = vmatprep.mubr.f32.mxu0 0.0
        %632 = vmatmul.mubr.f32.gmra.mxu0 %v530
        %v633 = vpop.f32.mrf.mxu0
        %v634 = vadd.f32 %v505, %v633
        %v635 = vpop.f32.mrf.mxu0
        %636 = vdwg.mxu0
        %v637 = vmax.f32 %v599, 0.0
        %v638 = vmax.f32 %v604, 0.0
        %v639 = vmax.f32 %v609, 0.0
        %v640 = vmax.f32 %v614, 0.0
        %v641 = vmax.f32 %v619, 0.0
        %v642 = vmax.f32 %v624, 0.0
        %v643 = vmax.f32 %v629, 0.0
        %v644 = vmax.f32 %v634, 0.0
        %v645 = vld [vmem:[%s5] sm:$0xff]
        %v646 = vld [vmem:[%s6] sm:$0xff]
        %648 = vset.pattern.permute.xlu0 0
        %649 = vperm.xlu0 %648, %v646
        %v650 = vpop.permute.xlu0 %649
        %v653 = vsel %vm507, %v645, 0
        %655 = vmatprep.subr.mxu0 0.0
        %656 = vmatpush1.msra.mxu0 0.0
        %657 = vmatprep.subr.mxu0 0.0
        %658 = vmatpush1.msra.mxu0 0.0
        %659 = vmatprep.subr.mxu0 0.0
        %660 = vmatpush1.msra.mxu0 0.0
        %661 = vmatprep.subr.mxu0 0.0
        %662 = vmatpush1.msra.mxu0 0.0
        %663 = vmatprep.subr.mxu0 0.0
        %664 = vmatpush1.msra.mxu0 0.0
        %665 = vmatprep.subr.mxu0 0.0
        %666 = vmatpush1.msra.mxu0 0.0
        %667 = vmatprep.subr.mxu0 0.0
        %668 = vmatpush1.msra.mxu0 0.0
        %669 = vmatprep.subr.mxu0 0.0
        %670 = vmatpush1.msra.mxu0 0.0
        %671 = vmatprep.subr.mxu0 0.0
        %672 = vmatpush1.msra.mxu0 %v644
        %673 = vmatprep.subr.mxu0 0.0
        %674 = vmatpush1.msra.mxu0 %v643
        %675 = vmatprep.subr.mxu0 0.0
        %676 = vmatpush1.msra.mxu0 %v642
        %677 = vmatprep.subr.mxu0 0.0
        %678 = vmatpush1.msra.mxu0 %v641
        %679 = vmatprep.subr.mxu0 0.0
        %680 = vmatpush1.msra.mxu0 %v640
        %681 = vmatprep.subr.mxu0 0.0
        %682 = vmatpush1.msra.mxu0 %v639
        %683 = vmatprep.subr.mxu0 0.0
        %684 = vmatpush1.msra.mxu0 %v638
        %685 = vmatprep.subr.mxu0 0.0
        %686 = vmatpush1.msra.mxu0 %v637
        %687 = vmatprep.subr.mxu0 0.0
        %688 = vmatpush2.msra.mxu0 0.0
        %689 = vmatprep.subr.mxu0 0.0
        %690 = vmatpush2.msra.mxu0 0.0
        %691 = vmatprep.subr.mxu0 0.0
        %692 = vmatpush2.msra.mxu0 0.0
        %693 = vmatprep.subr.mxu0 0.0
        %694 = vmatpush2.msra.mxu0 0.0
        %695 = vmatprep.subr.mxu0 0.0
        %696 = vmatpush2.msra.mxu0 0.0
        %697 = vmatprep.subr.mxu0 0.0
        %698 = vmatpush2.msra.mxu0 0.0
        %699 = vmatprep.subr.mxu0 0.0
        %700 = vmatpush2.msra.mxu0 0.0
        %701 = vmatprep.subr.mxu0 0.0
        %702 = vmatpush2.msra.mxu0 0.0
        %703 = vmatprep.subr.mxu0 0.0
        %704 = vmatpush2.msra.mxu0 0.0
        %705 = vmatprep.subr.mxu0 0.0
        %706 = vmatpush2.msra.mxu0 0.0
        %707 = vmatprep.subr.mxu0 0.0
        %708 = vmatpush2.msra.mxu0 0.0
        %709 = vmatprep.subr.mxu0 0.0
        %710 = vmatpush2.msra.mxu0 0.0
        %711 = vmatprep.subr.mxu0 0.0
        %712 = vmatpush2.msra.mxu0 0.0
        %713 = vmatprep.subr.mxu0 0.0
        %714 = vmatpush2.msra.mxu0 0.0
        %715 = vmatprep.subr.mxu0 0.0
        %716 = vmatpush2.msra.mxu0 0.0
        %717 = vmatprep.subr.mxu0 0.0
        %718 = vmatpush2.msra.mxu0 0.0
        %719 = vmatprep.mubr.f32.mxu0 0.0
        %720 = vmatmul.mubr.f32.gmra.mxu0 %v653
        %v721 = vpop.f32.mrf.mxu0
        %v722 = vadd.f32 %v650, %v721
        %v723 = vpop.f32.mrf.mxu0
        %724 = vdwg.mxu0
        %v725 = vxor.u32 %v722, 2147483648
        %v726 = vmul.f32 %v725, 1.442695
        %v727 = vpow.pop %v726
        %v728 = vadd.f32 %v727, 1.0
        %v729 = vrcp.pop %v728
        %v730 = vmul.f32 1.0, %v729
        %731 = vst [vmem:[%s269] sm:$0xff] %v730
        %s732 = sand.u32 %s181, 1
        %s733 = scalar_lea.sflag [#allocation3], %s732
        %s734 = sand.u32 %s181, 1
        %s735 = smul.addr %s734, 8
        %s736 = scalar_lea.vmem [#allocation2], %s735
        // Predicated region
        $region49: #{tpu_custom_call.1} parent=47 // pred_check
          %p737 = pneg %p191
        $region50: #{tpu_custom_call.1} parent=47 // pred_check_branch
          %739 = sbr.rel (%p737) target = $region52
        $region51: #{tpu_custom_call.1} parent=47 // pred_region
          %s741 = ssub.s32 128, 128
          %742 = vsyncadd %s733, %s741
          %s743 = smul.addr %s21, 128
          %s744 = scalar_lea.hbm %s7, %s743
          %s746 = sshll.u32 %s736, 4
          %s747 = int_to_ptr.vmem [resolvable:$true] %s746
          %749 = dma.vmem_to_hbm [thread:$0]  %s747, 128, %s744, %s733
        $region52: #{tpu_custom_call.1} parent=47 // pred_fallthru
          _
      $region48: #{tpu_custom_call.1} parent=5 // pred_fallthru
        _
      %p750 = scmp.le.s32.totalorder 2, %s16
      // Predicated region
      $region53: #{tpu_custom_call.1} parent=5 // pred_check
        %p751 = pneg %p750
      $region54: #{tpu_custom_call.1} parent=5 // pred_check_branch
        %753 = sbr.rel (%p751) target = $region56
      $region55: #{tpu_custom_call.1} parent=5 // pred_region
        %s754 = ssub.s32 %s16, 2
        // Predicated region
        $region57: #{tpu_custom_call.1} parent=55 // pred_check
          %p755 = pneg %p197
        $region58: #{tpu_custom_call.1} parent=55 // pred_check_branch
          %757 = sbr.rel (%p755) target = $region60
        $region59: #{tpu_custom_call.1} parent=55 // pred_region
          %s758 = sand.u32 %s182, 1
          %s759 = scalar_lea.sflag [#allocation3], %s758
          %s760 = sand.u32 %s182, 1
          %s761 = smul.addr %s760, 8
          %s762 = scalar_lea.vmem [#allocation2], %s761
          %763 = dma.done %s759, 128
        $region60: #{tpu_custom_call.1} parent=55 // pred_fallthru
          _
      $region56: #{tpu_custom_call.1} parent=5 // pred_fallthru
        _
    $region6: #{tpu_custom_call.1} parent=1 // loop_footer
      %s20 = sadd.s32 1, %s16
    $region7: #{tpu_custom_call.1} parent=1 // loop_footer_branch
      %15 = sbr.rel target = $region3
    $region8: #{tpu_custom_call.1} parent=1 // loop_exit
      _
    %764 = vsyncpa [#allocation3], 1
    %s765 = scalar_lea.sflag [#allocation3], 1
    %766 = vsyncpa %s765, 1

</llo_original>
